<compile_context>
chip_gen: v5e
topology: v5e:2x2
jax: 0.10.0
libtpu: 0.0.40
codegen_flags: <defaults>
</compile_context>

<pallas_src>
import functools

import jax
import jax.numpy as jnp
import numpy as np
from jax.experimental import pallas as pl
from jax.experimental.pallas import tpu as pltpu

EPS = 1e-07
CONF_THRESHOLD = 0.5
IOU_THRESHOLD = 0.5
TOTAL_CLASSES = 4          # parity with AveragePrecision.__init__ (unused by forward math)
NUM_CORES = 2              # v7x megacore lane-range split; sequential (harmless) on v5e/v6e
DEFAULT_LANE_TILE = 131072  # 128K lanes/step, multiple of 128; ~24 MiB double-buffered VMEM


def _tp_sum_kernel(pred_ref, act_ref, conf_ref, out_ref, *,
                   n_valid, blocks_per_core, lane_tile):
    c = pl.program_id(0)          # TensorCore split axis ("parallel")
    j = pl.program_id(1)          # lane-tile index within this core's range

    pb = pred_ref[...]            # (4, TN) rows: xmin, ymin, xmax, ymax (pred)
    ab = act_ref[...]             # (4, TN) rows: xmin, ymin, xmax, ymax (actual)
    conf = conf_ref[...]          # (1, TN)

    # ---- IOUScore forward (quirks reproduced exactly) ------------------------
    lo = jnp.maximum(pb, ab)      # rows 0,1 -> xmin, ymin   (one (4,TN) VPU op)
    hi = jnp.minimum(pb, ab)      # rows 2,3 -> xmax, ymax
    intersection_area = (hi[2:3, :] - lo[0:1, :]) * (hi[3:4, :] - lo[1:2, :])
    pred_area = (pb[3:4, :] - pb[0:1, :]) * (pb[2:3, :] - pb[1:2, :])
    act_area = (ab[3:4, :] - ab[0:1, :]) * (ab[2:3, :] - ab[1:2, :])
    union_area = pred_area + act_area
    iou = intersection_area / union_area + EPS            # (1, TN)

    # ---- thresholding + true-positive mask -----------------------------------
    conf_m = jnp.where(conf >= CONF_THRESHOLD, 1.0, 0.0)
    iou_m = jnp.where(iou >= IOU_THRESHOLD, 1.0, 0.0)
    tp = conf_m * iou_m                                   # (1, TN), finite 0/1

    # ---- ragged-tail / duplicated-block mask (replaces host-side padding) ----
    blk = c * blocks_per_core + j
    lane = jax.lax.broadcasted_iota(jnp.int32, tp.shape, 1)
    valid = blk * lane_tile + lane < n_valid
    tp = jnp.where(valid, tp, 0.0)

    # ---- per-core running sum; output block resident across the j axis -------
    @pl.when(j == 0)
    def _():
        out_ref[...] = jnp.zeros_like(out_ref)
    out_ref[...] += jnp.sum(tp, keepdims=True)            # broadcast into (1,128)


def average_precision(pred_boxes, actual_boxes, conf_scores, *,
                      lane_tile=DEFAULT_LANE_TILE):
    """pred_boxes/actual_boxes: (N, 4) float; conf_scores: (N,) float.
    Returns scalar pr_area (float32)."""
    # Coordinate-major slabs.  (Callers that already store boxes as (4, N)
    # coordinate-major can skip these transposes entirely.)
    pb_cm = jnp.asarray(pred_boxes, jnp.float32).T        # (4, N)
    ab_cm = jnp.asarray(actual_boxes, jnp.float32).T      # (4, N)
    cf = jnp.asarray(conf_scores, jnp.float32).reshape(1, -1)
    n = int(pb_cm.shape[1])

    # Lane-axis tiling: full-dim block for small N, big lane tiles otherwise.
    tn = n if n <= lane_tile else lane_tile               # lane_tile % 128 == 0
    nb = pl.cdiv(n, tn)                                   # total lane blocks
    bpc = pl.cdiv(nb, NUM_CORES)                          # blocks per core

    def box_map(c, j):
        # Clamp so the duplicated / ragged blocks of the second core read valid
        # memory; their contribution is zeroed by the in-kernel lane mask.
        return (0, jnp.minimum(c * bpc + j, nb - 1))

    kernel = functools.partial(_tp_sum_kernel, n_valid=n,
                               blocks_per_core=bpc, lane_tile=tn)
    out = pl.pallas_call(
        kernel,
        out_shape=jax.ShapeDtypeStruct((1, NUM_CORES * 128), jnp.float32),
        grid_spec=pltpu.PrefetchScalarGridSpec(
            num_scalar_prefetch=0,
            grid=(NUM_CORES, bpc),
            in_specs=[
                pl.BlockSpec((4, tn), box_map),            # pred boxes
                pl.BlockSpec((4, tn), box_map),            # actual boxes
                pl.BlockSpec((1, tn), box_map),            # conf scores
            ],
            out_specs=pl.BlockSpec((1, 128), lambda c, j: (0, c)),
        ),
        compiler_params=pltpu.CompilerParams(
            dimension_semantics=("parallel", "arbitrary"),
            vmem_limit_bytes=32 * 1024 * 1024,
        ),
    )(pb_cm, ab_cm, cf)

    # Combine per-core partial sums (each 128-lane block holds its core's S).
    s = out[0, 0] + out[0, 128]

    # tp[0]: tiny scalar epilogue in plain JAX (same quirky IoU formula).
    p0, a0 = pb_cm[:, 0], ab_cm[:, 0]
    inter0 = ((jnp.minimum(p0[2], a0[2]) - jnp.maximum(p0[0], a0[0]))
              * (jnp.minimum(p0[3], a0[3]) - jnp.maximum(p0[1], a0[1])))
    union0 = ((p0[3] - p0[0]) * (p0[2] - p0[1])
              + (a0[3] - a0[0]) * (a0[2] - a0[1]))
    iou0 = inter0 / union0 + EPS
    tp0 = (jnp.where(cf[0, 0] >= CONF_THRESHOLD, 1.0, 0.0)
           * jnp.where(iou0 >= IOU_THRESHOLD, 1.0, 0.0))

    # Telescoped trapezoid: 0.5*(S^2 - tp[0]^2) / (n * S).
    return 0.5 * (s * s - tp0 * tp0) / (jnp.float32(n) * s)


def _reference(pred_boxes, actual_boxes, conf_scores):
    pb = np.asarray(pred_boxes, np.float64)
    ab = np.asarray(actual_boxes, np.float64)
    cf = np.asarray(conf_scores, np.float64)
    xmin = np.maximum(pb[:, 0], ab[:, 0])
    ymin = np.maximum(pb[:, 1], ab[:, 1])
    xmax = np.minimum(pb[:, 2], ab[:, 2])
    ymax = np.minimum(pb[:, 3], ab[:, 3])
    pred_area = (pb[:, 3] - pb[:, 0]) * (pb[:, 2] - pb[:, 1])
    act_area = (ab[:, 3] - ab[:, 0]) * (ab[:, 2] - ab[:, 1])
    iou = (xmax - xmin) * (ymax - ymin) / (pred_area + act_area) + EPS
    conf_m = np.where(cf >= CONF_THRESHOLD, 1.0, 0.0)
    iou_m = np.where(iou >= IOU_THRESHOLD, 1.0, 0.0)
    tp = conf_m * iou_m
    recalls = np.cumsum(tp / np.sum(tp))
    precisions = np.cumsum(tp / len(tp))
    # np.trapz was removed in NumPy 2.x; trapezoid rule written out explicitly.
    return 0.5 * np.sum((precisions[1:] + precisions[:-1]) *
                        (recalls[1:] - recalls[:-1]))


if __name__ == "__main__":
    # TODO(synk): the original forward's dict-of-dicts box-matching loop is not
    # runnable PyTorch (uses undefined names); the kernel consumes already
    # matched (pred, actual) box pairs + confidence scores.
    N = 8
    key = jax.random.PRNGKey(0)
    k1, k2, k3, k4 = jax.random.split(key, 4)

    xy = jax.random.uniform(k1, (N, 2), minval=0.0, maxval=10.0)
    wh = jax.random.uniform(k2, (N, 2), minval=2.0, maxval=6.0)
    pred_boxes = jnp.concatenate([xy, xy + wh], axis=1)            # (N, 4) x1,y1,x2,y2
    jitter = jax.random.uniform(k3, (N, 4), minval=-0.3, maxval=0.3)
    actual_boxes = pred_boxes + jitter                              # (N, 4)
    conf_scores = jax.random.uniform(k4, (N,), minval=0.0, maxval=1.0)

    result = average_precision(pred_boxes, actual_boxes, conf_scores)
    result = jax.block_until_ready(result)

    ref = _reference(np.array(pred_boxes), np.array(actual_boxes),
                     np.array(conf_scores))
    assert np.allclose(np.array(result), ref, atol=1e-5, equal_nan=True), (
        f"mismatch: kernel={result} ref={ref}")
    print("KERNEL_OK")
</pallas_src>

<mosaic_0001>
module attributes {stable_mosaic.version = 11 : i64} {
  func.func @_tp_sum_kernel(%arg0: i32, %arg1: i32, %arg2: memref<4x8xf32, #tpu.memory_space<vmem>>, %arg3: memref<4x8xf32, #tpu.memory_space<vmem>>, %arg4: memref<1x8xf32, #tpu.memory_space<vmem>>, %arg5: memref<1x128xf32, #tpu.memory_space<vmem>>) attributes {dimension_semantics = [#tpu.dimension_semantics<parallel>, #tpu.dimension_semantics<arbitrary>], iteration_bounds = array<i64: 2, 1>, scalar_prefetch = 0 : i64, scratch_operands = 0 : i64, tpu.core_type = #tpu.core_type<tc>, window_params = [{transform_indices = @transform_0, window_bounds = array<i64: 4, 8>}, {transform_indices = @transform_1, window_bounds = array<i64: 4, 8>}, {transform_indices = @transform_2, window_bounds = array<i64: 1, 8>}, {transform_indices = @transform_3, window_bounds = array<i64: 1, 128>}]} {
    %c0 = arith.constant 0 : index
    %c0_0 = arith.constant 0 : index
    %0 = vector.load %arg2[%c0, %c0_0] : memref<4x8xf32, #tpu.memory_space<vmem>>, vector<4x8xf32>
    %c0_1 = arith.constant 0 : index
    %c0_2 = arith.constant 0 : index
    %1 = vector.load %arg3[%c0_1, %c0_2] : memref<4x8xf32, #tpu.memory_space<vmem>>, vector<4x8xf32>
    %c0_3 = arith.constant 0 : index
    %c0_4 = arith.constant 0 : index
    %2 = vector.load %arg4[%c0_3, %c0_4] : memref<1x8xf32, #tpu.memory_space<vmem>>, vector<1x8xf32>
    %3 = arith.maximumf %0, %1 : vector<4x8xf32>
    %4 = arith.minimumf %0, %1 : vector<4x8xf32>
    %5 = vector.extract_strided_slice %4 {offsets = [2, 0], sizes = [1, 8], strides = [1, 1]} : vector<4x8xf32> to vector<1x8xf32>
    %6 = vector.extract_strided_slice %3 {offsets = [0, 0], sizes = [1, 8], strides = [1, 1]} : vector<4x8xf32> to vector<1x8xf32>
    %7 = arith.subf %5, %6 : vector<1x8xf32>
    %8 = vector.extract_strided_slice %4 {offsets = [3, 0], sizes = [1, 8], strides = [1, 1]} : vector<4x8xf32> to vector<1x8xf32>
    %9 = vector.extract_strided_slice %3 {offsets = [1, 0], sizes = [1, 8], strides = [1, 1]} : vector<4x8xf32> to vector<1x8xf32>
    %10 = arith.subf %8, %9 : vector<1x8xf32>
    %11 = arith.mulf %7, %10 : vector<1x8xf32>
    %12 = vector.extract_strided_slice %0 {offsets = [3, 0], sizes = [1, 8], strides = [1, 1]} : vector<4x8xf32> to vector<1x8xf32>
    %13 = vector.extract_strided_slice %0 {offsets = [0, 0], sizes = [1, 8], strides = [1, 1]} : vector<4x8xf32> to vector<1x8xf32>
    %14 = arith.subf %12, %13 : vector<1x8xf32>
    %15 = vector.extract_strided_slice %0 {offsets = [2, 0], sizes = [1, 8], strides = [1, 1]} : vector<4x8xf32> to vector<1x8xf32>
    %16 = vector.extract_strided_slice %0 {offsets = [1, 0], sizes = [1, 8], strides = [1, 1]} : vector<4x8xf32> to vector<1x8xf32>
    %17 = arith.subf %15, %16 : vector<1x8xf32>
    %18 = arith.mulf %14, %17 : vector<1x8xf32>
    %19 = vector.extract_strided_slice %1 {offsets = [3, 0], sizes = [1, 8], strides = [1, 1]} : vector<4x8xf32> to vector<1x8xf32>
    %20 = vector.extract_strided_slice %1 {offsets = [0, 0], sizes = [1, 8], strides = [1, 1]} : vector<4x8xf32> to vector<1x8xf32>
    %21 = arith.subf %19, %20 : vector<1x8xf32>
    %22 = vector.extract_strided_slice %1 {offsets = [2, 0], sizes = [1, 8], strides = [1, 1]} : vector<4x8xf32> to vector<1x8xf32>
    %23 = vector.extract_strided_slice %1 {offsets = [1, 0], sizes = [1, 8], strides = [1, 1]} : vector<4x8xf32> to vector<1x8xf32>
    %24 = arith.subf %22, %23 : vector<1x8xf32>
    %25 = arith.mulf %21, %24 : vector<1x8xf32>
    %26 = arith.addf %18, %25 : vector<1x8xf32>
    %27 = arith.divf %11, %26 : vector<1x8xf32>
    %cst = arith.constant 1.000000e-07 : f32
    %28 = vector.broadcast %cst : f32 to vector<1x8xf32>
    %29 = arith.addf %27, %28 : vector<1x8xf32>
    %cst_5 = arith.constant 5.000000e-01 : f32
    %30 = vector.broadcast %cst_5 : f32 to vector<1x8xf32>
    %31 = arith.cmpf oge, %2, %30 : vector<1x8xf32>
    %cst_6 = arith.constant 1.000000e+00 : f32
    %cst_7 = arith.constant 0.000000e+00 : f32
    %32 = vector.broadcast %cst_6 : f32 to vector<1x8xf32>
    %33 = vector.broadcast %cst_7 : f32 to vector<1x8xf32>
    %34 = arith.select %31, %32, %33 : vector<1x8xi1>, vector<1x8xf32>
    %cst_8 = arith.constant 5.000000e-01 : f32
    %35 = vector.broadcast %cst_8 : f32 to vector<1x8xf32>
    %36 = arith.cmpf oge, %29, %35 : vector<1x8xf32>
    %cst_9 = arith.constant 1.000000e+00 : f32
    %cst_10 = arith.constant 0.000000e+00 : f32
    %37 = vector.broadcast %cst_9 : f32 to vector<1x8xf32>
    %38 = vector.broadcast %cst_10 : f32 to vector<1x8xf32>
    %39 = arith.select %36, %37, %38 : vector<1x8xi1>, vector<1x8xf32>
    %40 = arith.mulf %34, %39 : vector<1x8xf32>
    %c1_i32 = arith.constant 1 : i32
    %41 = arith.muli %arg0, %c1_i32 : i32
    %42 = arith.addi %41, %arg1 : i32
    %43 = tpu.iota {dimensions = array<i32: 1>} : vector<1x8xi32>
    %c8_i32 = arith.constant 8 : i32
    %44 = arith.muli %42, %c8_i32 : i32
    %45 = vector.broadcast %44 : i32 to vector<1x8xi32>
    %46 = arith.addi %45, %43 : vector<1x8xi32>
    %c8_i32_11 = arith.constant 8 : i32
    %47 = vector.broadcast %c8_i32_11 : i32 to vector<1x8xi32>
    %48 = arith.cmpi slt, %46, %47 : vector<1x8xi32>
    %cst_12 = arith.constant 0.000000e+00 : f32
    %49 = vector.broadcast %cst_12 : f32 to vector<1x8xf32>
    %50 = arith.select %48, %40, %49 : vector<1x8xi1>, vector<1x8xf32>
    %c0_i32 = arith.constant 0 : i32
    %51 = arith.cmpi eq, %arg1, %c0_i32 : i32
    %52 = arith.extui %51 : i1 to i32
    %c0_i32_13 = arith.constant 0 : i32
    %53 = arith.cmpi ne, %52, %c0_i32_13 : i32
    scf.if %53 {
      %cst_19 = arith.constant 0.000000e+00 : f32
      %63 = vector.broadcast %cst_19 : f32 to vector<1x128xf32>
      %c0_20 = arith.constant 0 : index
      %c0_21 = arith.constant 0 : index
      %64 = vector.load %arg5[%c0_20, %c0_21] : memref<1x128xf32, #tpu.memory_space<vmem>>, vector<1x128xf32>
      tpu.vector_store %arg5[%c0_20, %c0_21], %63 {strides = array<i32>} : memref<1x128xf32, #tpu.memory_space<vmem>>, vector<1x128xf32>,
    } else {
    }
    %c0_14 = arith.constant 0 : index
    %c0_15 = arith.constant 0 : index
    %54 = vector.load %arg5[%c0_14, %c0_15] : memref<1x128xf32, #tpu.memory_space<vmem>>, vector<1x128xf32>
    %55 = vector.shape_cast %50 : vector<1x8xf32> to vector<1x1x8xf32>
    %cst_16 = arith.constant dense<0.000000e+00> : vector<1xf32>
    %56 = vector.multi_reduction <add>, %55, %cst_16 [1, 2] : vector<1x1x8xf32> to vector<1xf32>
    %57 = vector.shape_cast %56 : vector<1xf32> to vector<1x1x1xf32>
    %58 = vector.extract %57[0, 0, 0] : f32 from vector<1x1x1xf32>
    %59 = vector.broadcast %58 : f32 to vector<1x1xf32>
    %60 = vector.broadcast %59 : vector<1x1xf32> to vector<1x128xf32>
    %61 = arith.addf %54, %60 : vector<1x128xf32>
    %c0_17 = arith.constant 0 : index
    %c0_18 = arith.constant 0 : index
    %62 = vector.load %arg5[%c0_17, %c0_18] : memref<1x128xf32, #tpu.memory_space<vmem>>, vector<1x128xf32>
    tpu.vector_store %arg5[%c0_17, %c0_18], %61 {strides = array<i32>} : memref<1x128xf32, #tpu.memory_space<vmem>>, vector<1x128xf32>,
    return
  }
  func.func @transform_0(%arg0: i32, %arg1: i32) -> (i32, i32) {
    %c1_i32 = arith.constant 1 : i32
    %0 = arith.muli %arg0, %c1_i32 : i32
    %1 = arith.addi %0, %arg1 : i32
    %c0_i32 = arith.constant 0 : i32
    %2 = arith.minsi %1, %c0_i32 : i32
    %c0_i32_0 = arith.constant 0 : i32
    %c0_i32_1 = arith.constant 0 : i32
    return %c0_i32_0, %2 : i32, i32
  }
  func.func @transform_1(%arg0: i32, %arg1: i32) -> (i32, i32) {
    %c1_i32 = arith.constant 1 : i32
    %0 = arith.muli %arg0, %c1_i32 : i32
    %1 = arith.addi %0, %arg1 : i32
    %c0_i32 = arith.constant 0 : i32
    %2 = arith.minsi %1, %c0_i32 : i32
    %c0_i32_0 = arith.constant 0 : i32
    %c0_i32_1 = arith.constant 0 : i32
    return %c0_i32_0, %2 : i32, i32
  }
  func.func @transform_2(%arg0: i32, %arg1: i32) -> (i32, i32) {
    %c1_i32 = arith.constant 1 : i32
    %0 = arith.muli %arg0, %c1_i32 : i32
    %1 = arith.addi %0, %arg1 : i32
    %c0_i32 = arith.constant 0 : i32
    %2 = arith.minsi %1, %c0_i32 : i32
    %c0_i32_0 = arith.constant 0 : i32
    %c0_i32_1 = arith.constant 0 : i32
    return %c0_i32_0, %2 : i32, i32
  }
  func.func @transform_3(%arg0: i32, %arg1: i32) -> (i32, i32) {
    %c0_i32 = arith.constant 0 : i32
    %c0_i32_0 = arith.constant 0 : i32
    return %c0_i32, %arg0 : i32, i32
  }
}

</mosaic_0001>

<llo_original>
// kernel: tpu_custom_call.1
$region0: #{tpu_custom_call.1}
  #allocation0 [shape = 'u32[]', space=smem, size = 0x4, offset = 0x4, fixed_abs, tag = 'smem constant byte address 0x4 - core index']
  #allocation1 [shape = 'u32[72,128]{1,0:T(1,128)}', space=vmem, size = 0x9000, scoped, tag = 'internal scratch']
  %s0 = inlined_call_operand.hbm [shape: f32[4,8], index: 0, kind: input, shape index: {}]
  %s1 = inlined_call_operand.hbm [shape: f32[4,8], index: 1, kind: input, shape index: {}]
  %s2 = inlined_call_operand.vmem [shape: f32[1,8], index: 2, kind: input, shape index: {}]
  %s3 = inlined_call_operand.hbm [shape: f32[1,256], index: 3, kind: output, shape index: {}]
  %s4 = sld [smem:[#allocation0]]
  $region57: #{tpu_custom_call.1} parent=0
    _
  %s6 = ssub.s32 1, %s4
  %s7 = scalar_select 0, %s6, %s4
  $region1: #{tpu_custom_call.1} parent=0
    #allocation2 [shape = 'u8[4096]{0}', space=vmem, size = 0x1000, scoped, tag = 'input window, operand 0']
    #allocation3 [shape = 's32[2]{0}', space=sflag, size = 0x8, scoped, tag = 'scoped memory for tpu_custom_call.1']
    #allocation4 [shape = 's32[2]{0}', space=sflag, size = 0x8, scoped, tag = 'scoped memory for tpu_custom_call.1']
    #allocation5 [shape = 'u8[4096]{0}', space=vmem, size = 0x1000, scoped, tag = 'input window, operand 1']
    #allocation6 [shape = 's32[2]{0}', space=sflag, size = 0x8, scoped, tag = 'scoped memory for tpu_custom_call.1']
    #allocation7 [shape = 'u8[1024]{0}', space=vmem, size = 0x400, scoped, tag = 'output window, operand 0']
    %8 = vsyncpa [#allocation3], 0
    %s9 = scalar_lea.sflag [#allocation3], 1
    %10 = vsyncpa %s9, 0
    %11 = vsyncpa [#allocation6], 0
    %s12 = scalar_lea.sflag [#allocation6], 1
    %13 = vsyncpa %s12, 0
    %14 = vsyncpa [#allocation4], 0
    %s15 = scalar_lea.sflag [#allocation4], 1
    %16 = vsyncpa %s15, 0
    loop: start=0, step=1, limit=4
    $region2: #{tpu_custom_call.1} parent=1 // loop_pre_header
      _
    $region3: #{tpu_custom_call.1} parent=1 // loop_header
      %s18 = sphi 0, %s22
      %p19 = scmp.ge.s32.totalorder %s18, 4
      %s25 = sphi 0, %s37
      %s26 = sphi 0, %s33
      %s27 = sphi 0, %s25
      %s28 = sphi 0, %s26
      %s29 = sphi 0, %s27
      %s30 = sphi 0, %s28
      %s46 = sphi 0, %s48
      %s49 = sphi 0, %s46
      %s50 = sphi 0, %s49
      %s66 = sphi 0, %s50
      %s78 = sphi 0, %s80
      %s81 = sphi 0, %s78
      %s82 = sphi 0, %s81
      %s98 = sphi 0, %s82
      %s110 = sphi 0, %s112
      %s113 = sphi 0, %s110
      %s114 = sphi 0, %s113
      %s130 = sphi 0, %s114
      %s136 = sphi 0, %s138
      %s139 = sphi 0, %s136
      %s140 = sphi 0, %s139
      %s156 = sphi 0, %s140
    $region4: #{tpu_custom_call.1} parent=1 // loop_header_branch
      %21 = sbr.rel (%p19) target = $region8
    $region5: #{tpu_custom_call.1} parent=1 // loop_body
      %s23 = ssub.s32 %s18, 1
      %s24 = ssub.s32 %s18, 2
      %s31 = sadd.s32 1, %s26
      %p32 = scmp.ge.s32.totalorder %s31, 1
      %s33 = scalar_select %p32, 0, %s31
      %s34 = sadd.s32 1, %s25
      %s35 = scalar_select %p32, %s34, %s25
      %p36 = scmp.ge.s32.totalorder %s35, 2
      %s37 = scalar_select %p36, 0, %s35
      %s38 = sadd.s32 %s25, %s26
      %p39 = scmp.lt.s32.totalorder %s38, 0
      %s40 = scalar_select %p39, %s38, 0
      %s41 = sadd.s32 %s37, %s33
      %p42 = scmp.lt.s32.totalorder %s41, 0
      %s43 = scalar_select %p42, %s41, 0
      %s44 = ssub.s32 %s40, %s43
      %p45 = scmp.eq.s32.totalorder %s44, 0
      %s47 = sadd.s32 %s46, 1
      %s48 = scalar_select %p45, %s46, %s47
      %p51 = pneg %p45
      %p52 = scmp.eq.s32.totalorder %s18, 1
      %p53 = por %p51, %p52
      %p54 = scmp.ne.s32.totalorder %s46, %s49
      %p55 = scmp.eq.s32.totalorder %s18, 0
      %p56 = por %p54, %p55
      %p57 = scmp.ne.s32.totalorder %s46, %s49
      %p58 = scmp.eq.s32.totalorder %s23, 1
      %p59 = por %p57, %p58
      %p60 = scmp.ne.s32.totalorder %s49, %s50
      %p61 = scmp.eq.s32.totalorder %s23, 0
      %p62 = por %p60, %p61
      %p63 = scmp.ne.s32.totalorder %s49, %s50
      %p64 = scmp.eq.s32.totalorder %s24, 1
      %p65 = por %p63, %p64
      %p67 = scmp.ne.s32.totalorder %s50, %s66
      %p68 = scmp.eq.s32.totalorder %s24, 0
      %p69 = por %p67, %p68
      %s70 = sadd.s32 %s25, %s26
      %p71 = scmp.lt.s32.totalorder %s70, 0
      %s72 = scalar_select %p71, %s70, 0
      %s73 = sadd.s32 %s37, %s33
      %p74 = scmp.lt.s32.totalorder %s73, 0
      %s75 = scalar_select %p74, %s73, 0
      %s76 = ssub.s32 %s72, %s75
      %p77 = scmp.eq.s32.totalorder %s76, 0
      %s79 = sadd.s32 %s78, 1
      %s80 = scalar_select %p77, %s78, %s79
      %p83 = pneg %p77
      %p84 = scmp.eq.s32.totalorder %s18, 1
      %p85 = por %p83, %p84
      %p86 = scmp.ne.s32.totalorder %s78, %s81
      %p87 = scmp.eq.s32.totalorder %s18, 0
      %p88 = por %p86, %p87
      %p89 = scmp.ne.s32.totalorder %s78, %s81
      %p90 = scmp.eq.s32.totalorder %s23, 1
      %p91 = por %p89, %p90
      %p92 = scmp.ne.s32.totalorder %s81, %s82
      %p93 = scmp.eq.s32.totalorder %s23, 0
      %p94 = por %p92, %p93
      %p95 = scmp.ne.s32.totalorder %s81, %s82
      %p96 = scmp.eq.s32.totalorder %s24, 1
      %p97 = por %p95, %p96
      %p99 = scmp.ne.s32.totalorder %s82, %s98
      %p100 = scmp.eq.s32.totalorder %s24, 0
      %p101 = por %p99, %p100
      %s102 = sadd.s32 %s25, %s26
      %p103 = scmp.lt.s32.totalorder %s102, 0
      %s104 = scalar_select %p103, %s102, 0
      %s105 = sadd.s32 %s37, %s33
      %p106 = scmp.lt.s32.totalorder %s105, 0
      %s107 = scalar_select %p106, %s105, 0
      %s108 = ssub.s32 %s104, %s107
      %p109 = scmp.eq.s32.totalorder %s108, 0
      %s111 = sadd.s32 %s110, 1
      %s112 = scalar_select %p109, %s110, %s111
      %p115 = pneg %p109
      %p116 = scmp.eq.s32.totalorder %s18, 1
      %p117 = por %p115, %p116
      %p118 = scmp.ne.s32.totalorder %s110, %s113
      %p119 = scmp.eq.s32.totalorder %s18, 0
      %p120 = por %p118, %p119
      %p121 = scmp.ne.s32.totalorder %s110, %s113
      %p122 = scmp.eq.s32.totalorder %s23, 1
      %p123 = por %p121, %p122
      %p124 = scmp.ne.s32.totalorder %s113, %s114
      %p125 = scmp.eq.s32.totalorder %s23, 0
      %p126 = por %p124, %p125
      %p127 = scmp.ne.s32.totalorder %s113, %s114
      %p128 = scmp.eq.s32.totalorder %s24, 1
      %p129 = por %p127, %p128
      %p131 = scmp.ne.s32.totalorder %s114, %s130
      %p132 = scmp.eq.s32.totalorder %s24, 0
      %p133 = por %p131, %p132
      %s134 = ssub.s32 %s25, %s37
      %p135 = scmp.eq.s32.totalorder %s134, 0
      %s137 = sadd.s32 %s136, 1
      %s138 = scalar_select %p135, %s136, %s137
      %p141 = pneg %p135
      %p142 = scmp.eq.s32.totalorder %s18, 1
      %p143 = por %p141, %p142
      %p144 = scmp.ne.s32.totalorder %s136, %s139
      %p145 = scmp.eq.s32.totalorder %s18, 0
      %p146 = por %p144, %p145
      %p147 = scmp.ne.s32.totalorder %s136, %s139
      %p148 = scmp.eq.s32.totalorder %s23, 1
      %p149 = por %p147, %p148
      %p150 = scmp.ne.s32.totalorder %s139, %s140
      %p151 = scmp.eq.s32.totalorder %s23, 0
      %p152 = por %p150, %p151
      %p153 = scmp.ne.s32.totalorder %s139, %s140
      %p154 = scmp.eq.s32.totalorder %s24, 1
      %p155 = por %p153, %p154
      %p157 = scmp.ne.s32.totalorder %s140, %s156
      %p158 = scmp.eq.s32.totalorder %s24, 0
      %p159 = por %p157, %p158
      %p160 = scmp.le.s32.totalorder 1, %s18
      %p161 = scmp.lt.s32.totalorder %s18, 3
      %p162 = pnand %p160, %p161
      %p163 = pneg %p162
      // Predicated region
      $region9: #{tpu_custom_call.1} parent=5 // pred_check
        _
      $region10: #{tpu_custom_call.1} parent=5 // pred_check_branch
        %165 = sbr.rel (%p162) target = $region12
      $region11: #{tpu_custom_call.1} parent=5 // pred_region
        %s166 = ssub.s32 %s18, 1
      $region12: #{tpu_custom_call.1} parent=5 // pred_fallthru
        _
      %p167 = scmp.lt.s32.totalorder %s18, 2
      // Predicated region
      $region13: #{tpu_custom_call.1} parent=5 // pred_check
        %p168 = pneg %p167
      $region14: #{tpu_custom_call.1} parent=5 // pred_check_branch
        %170 = sbr.rel (%p168) target = $region16
      $region15: #{tpu_custom_call.1} parent=5 // pred_region
        // Predicated region
        $region17: #{tpu_custom_call.1} parent=15 // pred_check
          %p171 = pneg %p56
        $region18: #{tpu_custom_call.1} parent=15 // pred_check_branch
          %173 = sbr.rel (%p171) target = $region20
        $region19: #{tpu_custom_call.1} parent=15 // pred_region
          %s174 = sand.u32 %s46, 1
          %s175 = scalar_lea.sflag [#allocation3], %s174
          %s176 = sand.u32 %s46, 1
          %s177 = smul.addr %s176, 4
          %s178 = scalar_lea.vmem [#allocation2], %s177
          %s179 = sadd.s32 %s25, %s26
          %p180 = scmp.lt.s32.totalorder %s179, 0
          %s181 = scalar_select %p180, %s179, 0
          %183 = vsyncadd %s175, 0
          %s184 = smul.addr %s181, 4
          %s185 = scalar_lea.hbm %s0, %s184
          %s187 = sshll.u32 %s185, 4
          %s188 = int_to_ptr.hbm [resolvable:$true] %s187
          %s189 = sshll.u32 %s178, 4
          %s190 = int_to_ptr.vmem [resolvable:$true] %s189
          %192 = dma.hbm_to_vmem [thread:$0]  %s188, 64, %s190, %s175
        $region20: #{tpu_custom_call.1} parent=15 // pred_fallthru
          _
        // Predicated region
        $region21: #{tpu_custom_call.1} parent=15 // pred_check
          %p193 = pneg %p88
        $region22: #{tpu_custom_call.1} parent=15 // pred_check_branch
          %195 = sbr.rel (%p193) target = $region24
        $region23: #{tpu_custom_call.1} parent=15 // pred_region
          %s196 = sand.u32 %s78, 1
          %s197 = scalar_lea.sflag [#allocation6], %s196
          %s198 = sand.u32 %s78, 1
          %s199 = smul.addr %s198, 4
          %s200 = scalar_lea.vmem [#allocation5], %s199
          %s201 = sadd.s32 %s25, %s26
          %p202 = scmp.lt.s32.totalorder %s201, 0
          %s203 = scalar_select %p202, %s201, 0
          %205 = vsyncadd %s197, 0
          %s206 = smul.addr %s203, 4
          %s207 = scalar_lea.hbm %s1, %s206
          %s209 = sshll.u32 %s207, 4
          %s210 = int_to_ptr.hbm [resolvable:$true] %s209
          %s211 = sshll.u32 %s200, 4
          %s212 = int_to_ptr.vmem [resolvable:$true] %s211
          %214 = dma.hbm_to_vmem [thread:$0]  %s210, 64, %s212, %s197
        $region24: #{tpu_custom_call.1} parent=15 // pred_fallthru
          _
        // Predicated region
        $region25: #{tpu_custom_call.1} parent=15 // pred_check
          %p215 = pneg %p120
        $region26: #{tpu_custom_call.1} parent=15 // pred_check_branch
          %217 = sbr.rel (%p215) target = $region28
        $region27: #{tpu_custom_call.1} parent=15 // pred_region
          %s218 = sadd.s32 %s25, %s26
          %p219 = scmp.lt.s32.totalorder %s218, 0
          %s220 = scalar_select %p219, %s218, 0
          %p221 = scmp.lt.s32.totalorder %s220, 0
          %s222 = scalar_select %p221, %s220, 0
          %s223 = scalar_lea.vmem %s2, %s222
          %s224 = sadd.s32 %s25, %s26
          %p225 = scmp.lt.s32.totalorder %s224, 0
          %s226 = scalar_select %p225, %s224, 0
        $region28: #{tpu_custom_call.1} parent=15 // pred_fallthru
          _
      $region16: #{tpu_custom_call.1} parent=5 // pred_fallthru
        _
      %p227 = scmp.le.s32.totalorder 1, %s18
      %p228 = scmp.lt.s32.totalorder %s18, 3
      %p229 = pnand %p227, %p228
      %p230 = pneg %p229
      // Predicated region
      $region29: #{tpu_custom_call.1} parent=5 // pred_check
        _
      $region30: #{tpu_custom_call.1} parent=5 // pred_check_branch
        %232 = sbr.rel (%p229) target = $region32
      $region31: #{tpu_custom_call.1} parent=5 // pred_region
        %s233 = ssub.s32 %s18, 1
        %s234 = sand.u32 %s49, 1
        %s235 = scalar_lea.sflag [#allocation3], %s234
        %s236 = sand.u32 %s49, 1
        %s237 = smul.addr %s236, 4
        %s238 = scalar_lea.vmem [#allocation2], %s237
        // Predicated region
        $region33: #{tpu_custom_call.1} parent=31 // pred_check
          %p239 = pneg %p62
        $region34: #{tpu_custom_call.1} parent=31 // pred_check_branch
          %241 = sbr.rel (%p239) target = $region36
        $region35: #{tpu_custom_call.1} parent=31 // pred_region
          %243 = dma.done %s235, 64
        $region36: #{tpu_custom_call.1} parent=31 // pred_fallthru
          _
        %s244 = sand.u32 %s81, 1
        %s245 = scalar_lea.sflag [#allocation6], %s244
        %s246 = sand.u32 %s81, 1
        %s247 = smul.addr %s246, 4
        %s248 = scalar_lea.vmem [#allocation5], %s247
        // Predicated region
        $region37: #{tpu_custom_call.1} parent=31 // pred_check
          %p249 = pneg %p94
        $region38: #{tpu_custom_call.1} parent=31 // pred_check_branch
          %251 = sbr.rel (%p249) target = $region40
        $region39: #{tpu_custom_call.1} parent=31 // pred_region
          %253 = dma.done %s245, 64
        $region40: #{tpu_custom_call.1} parent=31 // pred_fallthru
          _
        %s254 = sand.u32 %s49, 1
        %s255 = scalar_lea.sflag [#allocation3], %s254
        %s256 = sand.u32 %s49, 1
        %s257 = smul.addr %s256, 4
        %s258 = scalar_lea.vmem [#allocation2], %s257
        %p259 = pneg %p62
        %p260 = pneg %p59
        %s261 = sand.u32 %s81, 1
        %s262 = scalar_lea.sflag [#allocation6], %s261
        %s263 = sand.u32 %s81, 1
        %s264 = smul.addr %s263, 4
        %s265 = scalar_lea.vmem [#allocation5], %s264
        %p266 = pneg %p94
        %p267 = pneg %p91
        %s268 = sadd.s32 %s27, %s28
        %p269 = scmp.lt.s32.totalorder %s268, 0
        %s270 = scalar_select %p269, %s268, 0
        %p271 = scmp.lt.s32.totalorder %s270, 0
        %s272 = scalar_select %p271, %s270, 0
        %s273 = scalar_lea.vmem %s2, %s272
        %p274 = pneg %p126
        %p275 = pneg %p123
        %p276 = pneg %p152
        %p277 = pneg %p149
        %s278 = sand.u32 %s139, 1
        %s279 = scalar_lea.sflag [#allocation4], %s278
        %s280 = sand.u32 %s139, 1
        %s281 = scalar_lea.vmem [#allocation7], %s280
        %s282 = sadd.s32 %s27, %s28
        %p283 = scmp.lt.s32.totalorder %s282, 0
        %s284 = scalar_select %p283, %s282, 0
        %s285 = sadd.s32 %s27, %s28
        %p286 = scmp.lt.s32.totalorder %s285, 0
        %s287 = scalar_select %p286, %s285, 0
        %s288 = sadd.s32 %s27, %s28
        %p289 = scmp.lt.s32.totalorder %s288, 0
        %s290 = scalar_select %p289, %s288, 0
        %p291 = scmp.lt.s32.totalorder %s290, 0
        %s292 = scalar_select %p291, %s290, 0
        %s293 = scalar_lea.vmem %s2, %s292
        %s294 = sadd.s32 %s27, %s28
        %p295 = scmp.lt.s32.totalorder %s294, 0
        %s296 = scalar_select %p295, %s294, 0
        %v297 = vld [vmem:[%s238] sm:$0xf]
        %v298 = vld [vmem:[%s248] sm:$0xf]
        %v299 = vld [vmem:[%s293] sm:$0x1]
        %v300 = vmax.f32 %v297, %v298
        %v301 = vmin.f32 %v297, %v298
        %v303 = vrot.slane %v300, 6
        %v305 = vsub.f32 %v301, %v303
        %v307 = vrot.slane %v305, 1
        %v309 = vmul.f32 %v305, %v307
        %v311 = vrot.slane %v297, 5
        %v313 = vsub.f32 %v297, %v311
        %v314 = vrot.slane %v297, 7
        %v316 = vsub.f32 %v297, %v314
        %v318 = vrot.slane %v316, 7
        %v320 = vmul.f32 %v313, %v318
        %v322 = vrot.slane %v298, 5
        %v324 = vsub.f32 %v298, %v322
        %v325 = vrot.slane %v298, 7
        %v327 = vsub.f32 %v298, %v325
        %v329 = vrot.slane %v327, 7
        %v331 = vmul.f32 %v324, %v329
        %v332 = vadd.f32 %v320, %v331
        %v334 = vrot.slane %v332, 1
        %v336 = vrcp.pop %v334
        %v337 = vmul.f32 %v334, %v336
        %v338 = vsub.f32 1.0, %v337
        %v339 = vmul.f32 %v336, %v338
        %v340 = vadd.f32 %v336, %v339
        %vm341 = vweird.f32 %v334
        %vm342 = vweird.f32 %v336
        %vm343 = vmor %vm341, %vm342
        %v344 = vsel %vm343, %v336, %v340
        %v345 = vand.u32 2147483647, %v334
        %vm346 = vcmp.eq.f32.partialorder %v345, 8.507059e+37
        %v347 = vand.u32 %v334, 2147483648
        %v348 = vor.u32 1.1754944e-38, %v347
        %v349 = vsel %vm346, %v348, %v344
        %v350 = vmul.f32 %v309, %v349
        %v351 = vadd.f32 %v350, 1e-07
        %vm352 = vcmp.ge.f32.partialorder %v299, 0.5
        %v353 = vsel %vm352, 1.0, 0.0
        %vm354 = vcmp.ge.f32.partialorder %v351, 0.5
        %v355 = vsel %vm354, 1.0, 0.0
        %357 = vst [vmem:[#allocation1] sm:$0xff] %v355
        %s358 = scalar_lea.vmem [#allocation1], 2
        %v359 = vld [vmem:[%s358] ss:$9 sm:$0xff]
        %v361 = vmul.f32 %v353, %v359
        %s362 = sadd.s32 %s27, %s28
        %v363 = vlaneseq
        %v364 = vand.u32 %v363, 127
        %s365 = smul.u32 %s362, 8
        %v366 = vstv %s365
        %v367 = vadd.s32 %v366, %v364
        %vm368 = vcmp.lt.s32.totalorder %v367, 8
        %v369 = vsel %vm368, %v361, 0.0
        %p370 = scmp.eq.s32.totalorder %s28, 0
        // Predicated region
        $region41: #{tpu_custom_call.1} parent=31 // pred_check
          %p371 = pneg %p370
        $region42: #{tpu_custom_call.1} parent=31 // pred_check_branch
          %373 = sbr.rel (%p371) target = $region44
        $region43: #{tpu_custom_call.1} parent=31 // pred_region
          %374 = vst [vmem:[%s281] sm:$0x1] 0.0
        $region44: #{tpu_custom_call.1} parent=31 // pred_fallthru
          _
        %v375 = vld [vmem:[%s281] sm:$0x1]
        %vm376 = vcmask 57344
        %v377 = vsel %vm376, %v369, 0.0
        %378 = vadd.xlane.f32.xlu0 %v377
        %v379 = vpop.xlane.xlu0 %378
        %v380 = vrot.slane %v379, 4
        %v381 = vadd.f32 %v379, %v380
        %v382 = vrot.slane %v381, 2
        %v383 = vadd.f32 %v381, %v382
        %v384 = vrot.slane %v383, 1
        %v385 = vadd.f32 %v383, %v384
        %s386 = vtos %v385
        %v387 = vstv %s386
        %v388 = vadd.f32 %v375, %v387
        %389 = vst [vmem:[%s281] sm:$0x1] %v388
        %s390 = sand.u32 %s139, 1
        %s391 = scalar_lea.sflag [#allocation4], %s390
        %s392 = sand.u32 %s139, 1
        %s393 = scalar_lea.vmem [#allocation7], %s392
        // Predicated region
        $region45: #{tpu_custom_call.1} parent=31 // pred_check
          %p394 = pneg %p149
        $region46: #{tpu_custom_call.1} parent=31 // pred_check_branch
          %396 = sbr.rel (%p394) target = $region48
        $region47: #{tpu_custom_call.1} parent=31 // pred_region
          %398 = vsyncadd %s391, 0
          %s399 = scalar_lea.hbm %s3, %s27
          %s401 = sshll.u32 %s393, 4
          %s402 = int_to_ptr.vmem [resolvable:$true] %s401
          %s403 = sshll.u32 %s399, 4
          %s404 = int_to_ptr.hbm [resolvable:$true] %s403
          %406 = dma.vmem_to_hbm [thread:$0]  %s402, 16, %s404, %s391
        $region48: #{tpu_custom_call.1} parent=31 // pred_fallthru
          _
      $region32: #{tpu_custom_call.1} parent=5 // pred_fallthru
        _
      %p407 = scmp.le.s32.totalorder 2, %s18
      // Predicated region
      $region49: #{tpu_custom_call.1} parent=5 // pred_check
        %p408 = pneg %p407
      $region50: #{tpu_custom_call.1} parent=5 // pred_check_branch
        %410 = sbr.rel (%p408) target = $region52
      $region51: #{tpu_custom_call.1} parent=5 // pred_region
        %s411 = ssub.s32 %s18, 2
        // Predicated region
        $region53: #{tpu_custom_call.1} parent=51 // pred_check
          %p412 = pneg %p155
        $region54: #{tpu_custom_call.1} parent=51 // pred_check_branch
          %414 = sbr.rel (%p412) target = $region56
        $region55: #{tpu_custom_call.1} parent=51 // pred_region
          %s415 = sand.u32 %s140, 1
          %s416 = scalar_lea.sflag [#allocation4], %s415
          %s417 = sand.u32 %s140, 1
          %s418 = scalar_lea.vmem [#allocation7], %s417
          %420 = dma.done %s416, 16
        $region56: #{tpu_custom_call.1} parent=51 // pred_fallthru
          _
      $region52: #{tpu_custom_call.1} parent=5 // pred_fallthru
        _
    $region6: #{tpu_custom_call.1} parent=1 // loop_footer
      %s22 = sadd.s32 1, %s18
    $region7: #{tpu_custom_call.1} parent=1 // loop_footer_branch
      %17 = sbr.rel target = $region3
    $region8: #{tpu_custom_call.1} parent=1 // loop_exit
      _
    %421 = vsyncpa [#allocation3], 1
    %s422 = scalar_lea.sflag [#allocation3], 1
    %423 = vsyncpa %s422, 1
    %424 = vsyncpa [#allocation6], 1
    %s425 = scalar_lea.sflag [#allocation6], 1
    %426 = vsyncpa %s425, 1
    %427 = vsyncpa [#allocation4], 1
    %s428 = scalar_lea.sflag [#allocation4], 1
    %429 = vsyncpa %s428, 1

</llo_original>
